<compile_context>
chip_gen: v5e
topology: v5e:2x2
jax: 0.10.0
libtpu: 0.0.40
codegen_flags: <defaults>
</compile_context>

<pallas_src>
import functools

import numpy as np

import jax
import jax.numpy as jnp
from jax import lax
from jax.experimental import pallas as pl
from jax.experimental.pallas import tpu as pltpu


# ---------------------------------------------------------------------------
# Kernel 1: streamed masked-sum pooling over the sequence axis (HBM-bound).
# ---------------------------------------------------------------------------
def _pool_kernel(q_ref, p_ref, mask_ref, sq_out_ref, sp_out_ref,
                 sq_acc, sp_acc):
    c = pl.program_id(0)              # sequence partition (one per TensorCore)
    l = pl.program_id(1)              # L-tile index within this partition
    inner = pl.num_programs(1)

    @pl.when(l == 0)
    def _init():
        sq_acc[...] = jnp.zeros_like(sq_acc)
        sp_acc[...] = jnp.zeros_like(sp_acc)

    # Pad-mask slice for this tile; the whole mask stays resident in VMEM.
    m = mask_ref[c * inner + l]                       # (B, 1, tl)

    # Fused mask-multiply + sequence reduction as one batched MXU contraction:
    # (B, 1, tl) x (B, tl, D) -> (B, 1, D), accumulated in f32.
    dims = (((2,), (1,)), ((0,), (0,)))
    sq_acc[...] += lax.dot_general(m, q_ref[...], dims,
                                   preferred_element_type=jnp.float32)
    sp_acc[...] += lax.dot_general(m, p_ref[...], dims,
                                   preferred_element_type=jnp.float32)

    @pl.when(l == inner - 1)
    def _finalize():
        # Emit this partition's partial pooled sums (same (B,1,D) layout).
        sq_out_ref[0] = sq_acc[...]
        sp_out_ref[0] = sp_acc[...]


# ---------------------------------------------------------------------------
# Kernel 2: tiny O(B^2 * D) contrastive epilogue -> scalar loss.
# ---------------------------------------------------------------------------
def _epilogue_kernel(sq_ref, sp_ref, invd_ref, out_ref, *, inv_temp):
    inv_d = invd_ref[...]                                    # (B, 1) f32
    # Combine per-partition partial sums -> masked mean-pooled vectors.
    qv = jnp.sum(sq_ref[...], axis=0) * inv_d                # (B, D)
    pv = jnp.sum(sp_ref[...], axis=0) * inv_d                # (B, D)

    # NOTE: the PyTorch reference computes BOTH norms from q
    # (norm_p = torch.norm(q, ...)); reproduced exactly -- do not "fix".
    inv_norm = lax.rsqrt(jnp.sum(qv * qv, axis=1, keepdims=True))  # (B, 1)

    # Fold 1/temp and both inverse norms into the operands so the (B, B)
    # similarity comes straight out of one NT matmul (no transpose, no
    # extra (B,B) rescale pass).
    qs = qv * (inv_norm * inv_temp)
    ps = pv * inv_norm
    sim = lax.dot_general(qs, ps, (((1,), (1,)), ((), ())),
                          preferred_element_type=jnp.float32)      # (B, B)

    # NOTE: exp can overflow for |sim| > ~88 -- same behavior as the reference.
    e = jnp.exp(sim)
    b = e.shape[0]
    is_diag = (lax.broadcasted_iota(jnp.int32, (b, b), 0)
               == lax.broadcasted_iota(jnp.int32, (b, b), 1))
    pos = jnp.sum(jnp.where(is_diag, e, 0.0), axis=1)        # diag(e)
    neg = jnp.sum(e, axis=1) - pos                           # row sum - diag
    out_ref[0, 0] = jnp.mean(pos / neg)


# ---------------------------------------------------------------------------
# Wrapper helpers.
# ---------------------------------------------------------------------------
def _round_up(x, m):
    return ((x + m - 1) // m) * m


def _detect_num_tensorcores():
    """Best-effort TensorCore count (2 on v7x, 1 on v5e/v6e); falls back to 1.
    Pass num_partitions=2 explicitly on v7x if detection comes up empty."""
    try:
        info = pltpu.get_tpu_info()
        for name in ("num_cores", "core_count", "num_tensor_cores",
                     "num_tensorcores"):
            v = getattr(info, name, None)
            if isinstance(v, int) and 1 <= v <= 8:
                return v
    except Exception:
        pass
    try:
        v = getattr(jax.devices()[0], "num_cores", None)
        if isinstance(v, int) and 1 <= v <= 8:
            return v
    except Exception:
        pass
    return 1


def _vmem_budgets():
    """(per-input-tile byte budget, vmem_limit_bytes), by VMEM capacity."""
    vmem_phys = 0
    try:
        vmem_phys = int(pltpu.get_tpu_info().vmem_capacity_bytes)
    except Exception:
        pass
    if vmem_phys >= 96 * 1024 * 1024:        # v5e / v6e: 128 MiB physical VMEM
        return 20 * 1024 * 1024, 100 * 1024 * 1024
    # v7x (64 MiB physical) or unknown: stay conservative.
    return 5 * 1024 * 1024, 44 * 1024 * 1024


def _auto_l_tile(L_pad, B, D, itemsize, sub_mult, budget_bytes):
    """Largest tile that divides L_pad, is a multiple of the sublane packing
    and keeps one (double-buffered) input tile under the VMEM budget."""
    best = sub_mult
    for t in range(sub_mult, L_pad + 1, sub_mult):
        if L_pad % t == 0 and B * t * D * itemsize <= budget_bytes:
            best = t
    return best


# ---------------------------------------------------------------------------
# Public entry point.
# ---------------------------------------------------------------------------
def contrastive_loss(q, p, pad_mask=None, temp=0.05, *,
                     l_tile=None, num_partitions=None,
                     compute_dtype=jnp.bfloat16):
    """q, p: (B, L, D); pad_mask: (B, L); returns scalar f32 loss."""
    B, L, D = q.shape
    if pad_mask is None:
        pad_mask = jnp.ones((B, L), dtype=jnp.float32)

    # Pooling is HBM-bound: stream q/p as bf16 (accumulation stays f32).
    q = q.astype(compute_dtype)
    p = p.astype(compute_dtype)
    itemsize = jnp.dtype(compute_dtype).itemsize
    sub_mult = max(8, 32 // max(itemsize, 1))     # 8 for f32, 16 for bf16

    tile_budget, vmem_limit = _vmem_budgets()
    if l_tile is None:
        L_pad = _round_up(L, sub_mult)
        tl = _auto_l_tile(L_pad, B, D, itemsize, sub_mult, tile_budget)
    else:
        tl = int(l_tile)
        assert tl % sub_mult == 0, (tl, sub_mult)
        L_pad = _round_up(L, tl)

    # Zero-pad the sequence axis (padded positions are masked out -> identical).
    if L_pad != L:
        q = jnp.pad(q, ((0, 0), (0, L_pad - L), (0, 0)))
        p = jnp.pad(p, ((0, 0), (0, L_pad - L), (0, 0)))
        pad_mask = jnp.pad(pad_mask, ((0, 0), (0, L_pad - L)))

    num_l = L_pad // tl

    # Sequence partitions: one per TensorCore (2 on v7x) if it divides num_l.
    P = int(num_partitions) if num_partitions is not None \
        else _detect_num_tensorcores()
    if P < 1 or num_l % P != 0:
        P = 1
    inner = num_l // P

    # Pre-shape the (tiny) pad mask to (num_l, B, 1, tl): it stays resident in
    # VMEM; each step reads one (B,1,tl) slice as the MXU LHS (0/1 exact in bf16).
    mask4 = (pad_mask.reshape(B, num_l, 1, tl)
             .transpose(1, 0, 2, 3)
             .astype(compute_dtype))

    # Hoisted mask count (masked-mean denominator) -> epilogue-only input.
    # NOTE: an all-zero mask row gives inf/NaN, same as the PyTorch reference.
    inv_denom = (1.0 / jnp.sum(pad_mask, axis=1, keepdims=True)
                 ).astype(jnp.float32)                       # (B, 1)

    grid_spec = pltpu.PrefetchScalarGridSpec(
        num_scalar_prefetch=0,
        grid=(P, inner),
        in_specs=[
            pl.BlockSpec((B, tl, D), lambda c, l: (0, c * inner + l, 0)),  # q
            pl.BlockSpec((B, tl, D), lambda c, l: (0, c * inner + l, 0)),  # p
            pl.BlockSpec((num_l, B, 1, tl), lambda c, l: (0, 0, 0, 0)),    # mask
        ],
        out_specs=[
            pl.BlockSpec((1, B, 1, D), lambda c, l: (c, 0, 0, 0)),  # sum_q part
            pl.BlockSpec((1, B, 1, D), lambda c, l: (c, 0, 0, 0)),  # sum_p part
        ],
        scratch_shapes=[
            pltpu.VMEM((B, 1, D), jnp.float32),   # partial sum_q accumulator
            pltpu.VMEM((B, 1, D), jnp.float32),   # partial sum_p accumulator
        ],
    )

    cost = pl.CostEstimate(
        flops=2 * (2 * B * L_pad * D),            # two MACs per streamed elem
        transcendentals=0,
        bytes_accessed=(2 * B * L_pad * D * itemsize
                        + mask4.size * itemsize
                        + 2 * P * B * D * 4),
    )

    sq_part, sp_part = pl.pallas_call(
        _pool_kernel,
        out_shape=(jax.ShapeDtypeStruct((P, B, 1, D), jnp.float32),
                   jax.ShapeDtypeStruct((P, B, 1, D), jnp.float32)),
        grid_spec=grid_spec,
        compiler_params=pltpu.CompilerParams(
            dimension_semantics=("parallel", "arbitrary"),
            vmem_limit_bytes=vmem_limit),
        cost_estimate=cost,
    )(q, p, mask4)

    # Free XLA-level squeeze of the unit MXU dim between the two kernels.
    sq_part = sq_part.reshape(P, B, D)
    sp_part = sp_part.reshape(P, B, D)

    out = pl.pallas_call(
        functools.partial(_epilogue_kernel, inv_temp=1.0 / float(temp)),
        out_shape=jax.ShapeDtypeStruct((1, 1), jnp.float32),
        in_specs=[pl.BlockSpec(memory_space=pltpu.MemorySpace.VMEM)] * 3,
        out_specs=pl.BlockSpec(memory_space=pltpu.MemorySpace.SMEM),
    )(sq_part, sp_part, inv_denom)
    return out[0, 0]


# ---------------------------------------------------------------------------
# Pure NumPy (float64) reference mirroring the PyTorch module exactly,
# including the norm_p-computed-from-q "bug".
# ---------------------------------------------------------------------------
def _contrastive_loss_ref(q, p, pad_mask, temp):
    q = np.asarray(q, dtype=np.float64)
    p = np.asarray(p, dtype=np.float64)
    m = np.asarray(pad_mask, dtype=np.float64)
    q = q * m[:, :, None]
    p = p * m[:, :, None]
    denom = np.sum(m, axis=1, keepdims=True)
    qv = np.sum(q, axis=1) / denom
    pv = np.sum(p, axis=1) / denom
    dot = qv @ pv.T
    norm_q = np.linalg.norm(qv, axis=1)
    norm_p = np.linalg.norm(qv, axis=1)          # intentional: from q
    sim = dot / (norm_q[:, None] * norm_p[None, :]) / temp
    e = np.exp(sim)
    pos = np.diag(e)
    neg = np.sum(e, axis=1) - pos
    return np.mean(pos / neg)


if __name__ == "__main__":
    B, L, D = 2, 60, 32        # L=60 exercises the pad-to-tile-multiple path
    temp = 0.5

    key = jax.random.PRNGKey(0)
    kq, kp = jax.random.split(key)
    q = jax.random.normal(kq, (B, L, D), dtype=jnp.float32)
    p = jax.random.normal(kp, (B, L, D), dtype=jnp.float32)
    # pad_mask: row 0 fully valid, row 1 has the last 5 positions padded.
    pad_mask = jnp.ones((B, L), dtype=jnp.float32)
    pad_mask = pad_mask.at[1, L - 5:].set(0.0)

    # Forced small tile + 2 partitions exercises init/accumulate/finalize and
    # the multi-partition (dual-TensorCore-on-v7x) path even at toy size.
    loss = contrastive_loss(q, p, pad_mask, temp, l_tile=16, num_partitions=2)
    jax.block_until_ready(loss)

    # Default auto-tiling / auto-partition path.
    loss_auto = contrastive_loss(q, p, pad_mask, temp)
    jax.block_until_ready(loss_auto)

    # Reference on the same bf16-quantised inputs (the kernel streams bf16),
    # computed in float64 on host.  Tolerance is loose enough to also cover a
    # reduced-precision MXU pass in the tiny epilogue matmul; typical
    # agreement is far tighter.
    q_b = np.asarray(q.astype(jnp.bfloat16).astype(jnp.float32))
    p_b = np.asarray(p.astype(jnp.bfloat16).astype(jnp.float32))
    ref = _contrastive_loss_ref(q_b, p_b, pad_mask, temp)

    assert jnp.allclose(loss, ref, rtol=3e-2, atol=1e-4), (loss, ref)
    assert jnp.allclose(loss_auto, ref, rtol=3e-2, atol=1e-4), (loss_auto, ref)
    # The two tilings must agree with each other much more tightly.
    assert jnp.allclose(loss, loss_auto, rtol=1e-3, atol=1e-6), (loss, loss_auto)

    print("KERNEL_OK")
</pallas_src>

<mosaic_0001>
module attributes {stable_mosaic.version = 11 : i64} {
  func.func @_pool_kernel(%arg0: i32, %arg1: i32, %arg2: memref<2x16x32xbf16, #tpu.memory_space<vmem>>, %arg3: memref<2x16x32xbf16, #tpu.memory_space<vmem>>, %arg4: memref<4x2x1x16xbf16, #tpu.memory_space<vmem>>, %arg5: memref<1x2x1x32xf32, #tpu.memory_space<vmem>>, %arg6: memref<1x2x1x32xf32, #tpu.memory_space<vmem>>, %arg7: memref<2x1x32xf32, #tpu.memory_space<vmem>>, %arg8: memref<2x1x32xf32, #tpu.memory_space<vmem>>) attributes {dimension_semantics = [#tpu.dimension_semantics<parallel>, #tpu.dimension_semantics<arbitrary>], iteration_bounds = array<i64: 2, 2>, scalar_prefetch = 0 : i64, scratch_operands = 2 : i64, tpu.core_type = #tpu.core_type<tc>, window_params = [{transform_indices = @transform_0, window_bounds = array<i64: 2, 16, 32>}, {transform_indices = @transform_1, window_bounds = array<i64: 2, 16, 32>}, {pipeline_mode = #tpu.pipeline_mode<synchronous>, transform_indices = @transform_2, window_bounds = array<i64: 4, 2, 1, 16>}, {transform_indices = @transform_3, window_bounds = array<i64: 1, 2, 1, 32>}, {transform_indices = @transform_4, window_bounds = array<i64: 1, 2, 1, 32>}]} {
    %c0_i32 = arith.constant 0 : i32
    %0 = arith.cmpi eq, %arg1, %c0_i32 : i32
    %1 = arith.extui %0 : i1 to i32
    %c0_i32_0 = arith.constant 0 : i32
    %2 = arith.cmpi ne, %1, %c0_i32_0 : i32
    scf.if %2 {
      %cst_23 = arith.constant 0.000000e+00 : f32
      %21 = vector.broadcast %cst_23 : f32 to vector<2x1x32xf32>
      %c0_24 = arith.constant 0 : index
      %c0_25 = arith.constant 0 : index
      %c0_26 = arith.constant 0 : index
      %22 = vector.load %arg7[%c0_24, %c0_25, %c0_26] : memref<2x1x32xf32, #tpu.memory_space<vmem>>, vector<2x1x32xf32>
      tpu.vector_store %arg7[%c0_24, %c0_25, %c0_26], %21 {strides = array<i32>} : memref<2x1x32xf32, #tpu.memory_space<vmem>>, vector<2x1x32xf32>,
      %cst_27 = arith.constant 0.000000e+00 : f32
      %23 = vector.broadcast %cst_27 : f32 to vector<2x1x32xf32>
      %c0_28 = arith.constant 0 : index
      %c0_29 = arith.constant 0 : index
      %c0_30 = arith.constant 0 : index
      %24 = vector.load %arg8[%c0_28, %c0_29, %c0_30] : memref<2x1x32xf32, #tpu.memory_space<vmem>>, vector<2x1x32xf32>
      tpu.vector_store %arg8[%c0_28, %c0_29, %c0_30], %23 {strides = array<i32>} : memref<2x1x32xf32, #tpu.memory_space<vmem>>, vector<2x1x32xf32>,
    } else {
    }
    %c2_i32 = arith.constant 2 : i32
    %3 = arith.muli %arg0, %c2_i32 : i32
    %4 = arith.addi %3, %arg1 : i32
    %5 = arith.index_cast %4 : i32 to index
    %c0 = arith.constant 0 : index
    %c0_1 = arith.constant 0 : index
    %c0_2 = arith.constant 0 : index
    %6 = vector.load %arg4[%5, %c0, %c0_1, %c0_2] : memref<4x2x1x16xbf16, #tpu.memory_space<vmem>>, vector<1x2x1x16xbf16>
    %7 = vector.shape_cast %6 : vector<1x2x1x16xbf16> to vector<2x1x16xbf16>
    %c0_3 = arith.constant 0 : index
    %c0_4 = arith.constant 0 : index
    %c0_5 = arith.constant 0 : index
    %8 = vector.load %arg7[%c0_3, %c0_4, %c0_5] : memref<2x1x32xf32, #tpu.memory_space<vmem>>, vector<2x1x32xf32>
    %c0_6 = arith.constant 0 : index
    %c0_7 = arith.constant 0 : index
    %c0_8 = arith.constant 0 : index
    %9 = vector.load %arg2[%c0_6, %c0_7, %c0_8] : memref<2x16x32xbf16, #tpu.memory_space<vmem>>, vector<2x16x32xbf16>
    %cst = arith.constant dense<0.000000e+00> : vector<2x1x32xf32>
    %10 = tpu.matmul %7, %9, %cst {dimension_numbers = #tpu.dot_dimension_numbers<[2], [1], [1], [2], [0, 0, 0, 1, 1, 2], [0], [0]>} : vector<2x1x16xbf16>, vector<2x16x32xbf16>, vector<2x1x32xf32> -> vector<2x1x32xf32>
    %11 = arith.addf %8, %10 : vector<2x1x32xf32>
    %c0_9 = arith.constant 0 : index
    %c0_10 = arith.constant 0 : index
    %c0_11 = arith.constant 0 : index
    %12 = vector.load %arg7[%c0_9, %c0_10, %c0_11] : memref<2x1x32xf32, #tpu.memory_space<vmem>>, vector<2x1x32xf32>
    tpu.vector_store %arg7[%c0_9, %c0_10, %c0_11], %11 {strides = array<i32>} : memref<2x1x32xf32, #tpu.memory_space<vmem>>, vector<2x1x32xf32>,
    %c0_12 = arith.constant 0 : index
    %c0_13 = arith.constant 0 : index
    %c0_14 = arith.constant 0 : index
    %13 = vector.load %arg8[%c0_12, %c0_13, %c0_14] : memref<2x1x32xf32, #tpu.memory_space<vmem>>, vector<2x1x32xf32>
    %c0_15 = arith.constant 0 : index
    %c0_16 = arith.constant 0 : index
    %c0_17 = arith.constant 0 : index
    %14 = vector.load %arg3[%c0_15, %c0_16, %c0_17] : memref<2x16x32xbf16, #tpu.memory_space<vmem>>, vector<2x16x32xbf16>
    %cst_18 = arith.constant dense<0.000000e+00> : vector<2x1x32xf32>
    %15 = tpu.matmul %7, %14, %cst_18 {dimension_numbers = #tpu.dot_dimension_numbers<[2], [1], [1], [2], [0, 0, 0, 1, 1, 2], [0], [0]>} : vector<2x1x16xbf16>, vector<2x16x32xbf16>, vector<2x1x32xf32> -> vector<2x1x32xf32>
    %16 = arith.addf %13, %15 : vector<2x1x32xf32>
    %c0_19 = arith.constant 0 : index
    %c0_20 = arith.constant 0 : index
    %c0_21 = arith.constant 0 : index
    %17 = vector.load %arg8[%c0_19, %c0_20, %c0_21] : memref<2x1x32xf32, #tpu.memory_space<vmem>>, vector<2x1x32xf32>
    tpu.vector_store %arg8[%c0_19, %c0_20, %c0_21], %16 {strides = array<i32>} : memref<2x1x32xf32, #tpu.memory_space<vmem>>, vector<2x1x32xf32>,
    %c1_i32 = arith.constant 1 : i32
    %18 = arith.cmpi eq, %arg1, %c1_i32 : i32
    %19 = arith.extui %18 : i1 to i32
    %c0_i32_22 = arith.constant 0 : i32
    %20 = arith.cmpi ne, %19, %c0_i32_22 : i32
    scf.if %20 {
      %c0_23 = arith.constant 0 : index
      %c0_24 = arith.constant 0 : index
      %c0_25 = arith.constant 0 : index
      %21 = vector.load %arg7[%c0_23, %c0_24, %c0_25] : memref<2x1x32xf32, #tpu.memory_space<vmem>>, vector<2x1x32xf32>
      %c0_26 = arith.constant 0 : index
      %c0_27 = arith.constant 0 : index
      %c0_28 = arith.constant 0 : index
      %c0_29 = arith.constant 0 : index
      %22 = vector.load %arg5[%c0_26, %c0_27, %c0_28, %c0_29] : memref<1x2x1x32xf32, #tpu.memory_space<vmem>>, vector<1x2x1x32xf32>
      %23 = vector.shape_cast %22 : vector<1x2x1x32xf32> to vector<2x1x32xf32>
      %24 = vector.shape_cast %21 : vector<2x1x32xf32> to vector<1x2x1x32xf32>
      tpu.vector_store %arg5[%c0_26, %c0_27, %c0_28, %c0_29], %24 {strides = array<i32>} : memref<1x2x1x32xf32, #tpu.memory_space<vmem>>, vector<1x2x1x32xf32>,
      %c0_30 = arith.constant 0 : index
      %c0_31 = arith.constant 0 : index
      %c0_32 = arith.constant 0 : index
      %25 = vector.load %arg8[%c0_30, %c0_31, %c0_32] : memref<2x1x32xf32, #tpu.memory_space<vmem>>, vector<2x1x32xf32>
      %c0_33 = arith.constant 0 : index
      %c0_34 = arith.constant 0 : index
      %c0_35 = arith.constant 0 : index
      %c0_36 = arith.constant 0 : index
      %26 = vector.load %arg6[%c0_33, %c0_34, %c0_35, %c0_36] : memref<1x2x1x32xf32, #tpu.memory_space<vmem>>, vector<1x2x1x32xf32>
      %27 = vector.shape_cast %26 : vector<1x2x1x32xf32> to vector<2x1x32xf32>
      %28 = vector.shape_cast %25 : vector<2x1x32xf32> to vector<1x2x1x32xf32>
      tpu.vector_store %arg6[%c0_33, %c0_34, %c0_35, %c0_36], %28 {strides = array<i32>} : memref<1x2x1x32xf32, #tpu.memory_space<vmem>>, vector<1x2x1x32xf32>,
    } else {
    }
    return
  }
  func.func @transform_0(%arg0: i32, %arg1: i32) -> (i32, i32, i32) {
    %c2_i32 = arith.constant 2 : i32
    %0 = arith.muli %arg0, %c2_i32 : i32
    %1 = arith.addi %0, %arg1 : i32
    %c0_i32 = arith.constant 0 : i32
    %c0_i32_0 = arith.constant 0 : i32
    %c0_i32_1 = arith.constant 0 : i32
    return %c0_i32, %1, %c0_i32_0 : i32, i32, i32
  }
  func.func @transform_1(%arg0: i32, %arg1: i32) -> (i32, i32, i32) {
    %c2_i32 = arith.constant 2 : i32
    %0 = arith.muli %arg0, %c2_i32 : i32
    %1 = arith.addi %0, %arg1 : i32
    %c0_i32 = arith.constant 0 : i32
    %c0_i32_0 = arith.constant 0 : i32
    %c0_i32_1 = arith.constant 0 : i32
    return %c0_i32, %1, %c0_i32_0 : i32, i32, i32
  }
  func.func @transform_2(%arg0: i32, %arg1: i32) -> (i32, i32, i32, i32) {
    %c0_i32 = arith.constant 0 : i32
    %c0_i32_0 = arith.constant 0 : i32
    %c0_i32_1 = arith.constant 0 : i32
    %c0_i32_2 = arith.constant 0 : i32
    %c0_i32_3 = arith.constant 0 : i32
    return %c0_i32, %c0_i32_0, %c0_i32_1, %c0_i32_2 : i32, i32, i32, i32
  }
  func.func @transform_3(%arg0: i32, %arg1: i32) -> (i32, i32, i32, i32) {
    %c0_i32 = arith.constant 0 : i32
    %c0_i32_0 = arith.constant 0 : i32
    %c0_i32_1 = arith.constant 0 : i32
    %c0_i32_2 = arith.constant 0 : i32
    return %arg0, %c0_i32, %c0_i32_0, %c0_i32_1 : i32, i32, i32, i32
  }
  func.func @transform_4(%arg0: i32, %arg1: i32) -> (i32, i32, i32, i32) {
    %c0_i32 = arith.constant 0 : i32
    %c0_i32_0 = arith.constant 0 : i32
    %c0_i32_1 = arith.constant 0 : i32
    %c0_i32_2 = arith.constant 0 : i32
    return %arg0, %c0_i32, %c0_i32_0, %c0_i32_1 : i32, i32, i32, i32
  }
}

</mosaic_0001>

<llo_original>
// kernel: tpu_custom_call.1
$region0: #{tpu_custom_call.1}
  #allocation0 [shape = 'u32[]', space=smem, size = 0x4, offset = 0x4, fixed_abs, tag = 'smem constant byte address 0x4 - core index']
  #allocation1 [shape = 'u32[72,128]{1,0:T(1,128)}', space=vmem, size = 0x9000, scoped, tag = 'internal scratch']
  #allocation2 [shape = 'f32[2,1,32]{2,1,0:T(1,128)}', space=vmem, size = 0x400, scoped, tag = 'scratch operand']
  #allocation3 [shape = 'f32[2,1,32]{2,1,0:T(1,128)}', space=vmem, size = 0x400, scoped, tag = 'scratch operand']
  %s0 = inlined_call_operand.vmem [shape: bf16[2,64,32], index: 0, kind: input, shape index: {}]
  %s1 = inlined_call_operand.vmem [shape: bf16[2,64,32], index: 1, kind: input, shape index: {}]
  %s2 = inlined_call_operand.vmem [shape: bf16[4,2,1,16], index: 2, kind: input, shape index: {}]
  %s3 = inlined_call_operand.hbm [shape: f32[2,2,1,32], index: 3, kind: output, shape index: {0}]
  %s4 = inlined_call_operand.hbm [shape: f32[2,2,1,32], index: 4, kind: output, shape index: {1}]
  %5 = xla_tuple %s3, %s4
  %s6 = sld [smem:[#allocation0]]
  $region143: #{tpu_custom_call.1} parent=0
    _
  %s8 = ssub.s32 1, %s6
  %s9 = scalar_select 0, %s8, %s6
  $region1: #{tpu_custom_call.1} parent=0
    #allocation4 [shape = 'u8[16384]{0}', space=vmem, size = 0x4000, scoped, tag = 'input window, operand 0']
    #allocation5 [shape = 'u8[16384]{0}', space=vmem, size = 0x4000, scoped, tag = 'input window, operand 1']
    #allocation6 [shape = 'u8[2048]{0}', space=vmem, size = 0x800, scoped, tag = 'output window, operand 0']
    #allocation7 [shape = 's32[2]{0}', space=sflag, size = 0x8, scoped, tag = 'scoped memory for tpu_custom_call.1']
    #allocation8 [shape = 'u8[2048]{0}', space=vmem, size = 0x800, scoped, tag = 'output window, operand 1']
    #allocation9 [shape = 's32[2]{0}', space=sflag, size = 0x8, scoped, tag = 'scoped memory for tpu_custom_call.1']
    %10 = vsyncpa [#allocation7], 0
    %s11 = scalar_lea.sflag [#allocation7], 1
    %12 = vsyncpa %s11, 0
    %13 = vsyncpa [#allocation9], 0
    %s14 = scalar_lea.sflag [#allocation9], 1
    %15 = vsyncpa %s14, 0
    loop: start=0, step=1, limit=6
    $region2: #{tpu_custom_call.1} parent=1 // loop_pre_header
      _
    $region3: #{tpu_custom_call.1} parent=1 // loop_header
      %s17 = sphi 0, %s21
      %p18 = scmp.ge.s32.totalorder %s17, 6
      %s24 = sphi 0, %s36
      %s25 = sphi 0, %s32
      %s26 = sphi 0, %s24
      %s27 = sphi 0, %s25
      %s28 = sphi 0, %s26
      %s29 = sphi 0, %s27
      %s43 = sphi 0, %s45
      %s46 = sphi 0, %s43
      %s47 = sphi 0, %s46
      %s63 = sphi 0, %s47
      %s73 = sphi 0, %s75
      %s76 = sphi 0, %s73
      %s77 = sphi 0, %s76
      %s93 = sphi 0, %s77
      %s97 = sphi 0, %s97
      %s99 = sphi 0, %s97
      %s100 = sphi 0, %s99
      %s114 = sphi 0, %s100
      %s120 = sphi 0, %s122
      %s123 = sphi 0, %s120
      %s124 = sphi 0, %s123
      %s140 = sphi 0, %s124
      %s146 = sphi 0, %s148
      %s149 = sphi 0, %s146
      %s150 = sphi 0, %s149
      %s166 = sphi 0, %s150
    $region4: #{tpu_custom_call.1} parent=1 // loop_header_branch
      %20 = sbr.rel (%p18) target = $region8
    $region5: #{tpu_custom_call.1} parent=1 // loop_body
      %s22 = ssub.s32 %s17, 1
      %s23 = ssub.s32 %s17, 2
      %s30 = sadd.s32 1, %s25
      %p31 = scmp.ge.s32.totalorder %s30, 2
      %s32 = scalar_select %p31, 0, %s30
      %s33 = sadd.s32 1, %s24
      %s34 = scalar_select %p31, %s33, %s24
      %p35 = scmp.ge.s32.totalorder %s34, 2
      %s36 = scalar_select %p35, 0, %s34
      %s37 = smul.u32 %s24, 2
      %s38 = sadd.s32 %s37, %s25
      %s39 = smul.u32 %s36, 2
      %s40 = sadd.s32 %s39, %s32
      %s41 = ssub.s32 %s38, %s40
      %p42 = scmp.eq.s32.totalorder %s41, 0
      %s44 = sadd.s32 %s43, 1
      %s45 = scalar_select %p42, %s43, %s44
      %p48 = pneg %p42
      %p49 = scmp.eq.s32.totalorder %s17, 3
      %p50 = por %p48, %p49
      %p51 = scmp.ne.s32.totalorder %s43, %s46
      %p52 = scmp.eq.s32.totalorder %s17, 0
      %p53 = por %p51, %p52
      %p54 = scmp.ne.s32.totalorder %s43, %s46
      %p55 = scmp.eq.s32.totalorder %s22, 3
      %p56 = por %p54, %p55
      %p57 = scmp.ne.s32.totalorder %s46, %s47
      %p58 = scmp.eq.s32.totalorder %s22, 0
      %p59 = por %p57, %p58
      %p60 = scmp.ne.s32.totalorder %s46, %s47
      %p61 = scmp.eq.s32.totalorder %s23, 3
      %p62 = por %p60, %p61
      %p64 = scmp.ne.s32.totalorder %s47, %s63
      %p65 = scmp.eq.s32.totalorder %s23, 0
      %p66 = por %p64, %p65
      %s67 = smul.u32 %s24, 2
      %s68 = sadd.s32 %s67, %s25
      %s69 = smul.u32 %s36, 2
      %s70 = sadd.s32 %s69, %s32
      %s71 = ssub.s32 %s68, %s70
      %p72 = scmp.eq.s32.totalorder %s71, 0
      %s74 = sadd.s32 %s73, 1
      %s75 = scalar_select %p72, %s73, %s74
      %p78 = pneg %p72
      %p79 = scmp.eq.s32.totalorder %s17, 3
      %p80 = por %p78, %p79
      %p81 = scmp.ne.s32.totalorder %s73, %s76
      %p82 = scmp.eq.s32.totalorder %s17, 0
      %p83 = por %p81, %p82
      %p84 = scmp.ne.s32.totalorder %s73, %s76
      %p85 = scmp.eq.s32.totalorder %s22, 3
      %p86 = por %p84, %p85
      %p87 = scmp.ne.s32.totalorder %s76, %s77
      %p88 = scmp.eq.s32.totalorder %s22, 0
      %p89 = por %p87, %p88
      %p90 = scmp.ne.s32.totalorder %s76, %s77
      %p91 = scmp.eq.s32.totalorder %s23, 3
      %p92 = por %p90, %p91
      %p94 = scmp.ne.s32.totalorder %s77, %s93
      %p95 = scmp.eq.s32.totalorder %s23, 0
      %p96 = por %p94, %p95
      %s98 = sadd.s32 %s97, 1
      %p101 = scmp.eq.s32.totalorder %s17, 3
      %p102 = scmp.ne.s32.totalorder %s97, %s99
      %p103 = scmp.eq.s32.totalorder %s17, 0
      %p104 = por %p102, %p103
      %p105 = scmp.ne.s32.totalorder %s97, %s99
      %p106 = scmp.eq.s32.totalorder %s22, 3
      %p107 = por %p105, %p106
      %p108 = scmp.ne.s32.totalorder %s99, %s100
      %p109 = scmp.eq.s32.totalorder %s22, 0
      %p110 = por %p108, %p109
      %p111 = scmp.ne.s32.totalorder %s99, %s100
      %p112 = scmp.eq.s32.totalorder %s23, 3
      %p113 = por %p111, %p112
      %p115 = scmp.ne.s32.totalorder %s100, %s114
      %p116 = scmp.eq.s32.totalorder %s23, 0
      %p117 = por %p115, %p116
      %s118 = ssub.s32 %s24, %s36
      %p119 = scmp.eq.s32.totalorder %s118, 0
      %s121 = sadd.s32 %s120, 1
      %s122 = scalar_select %p119, %s120, %s121
      %p125 = pneg %p119
      %p126 = scmp.eq.s32.totalorder %s17, 3
      %p127 = por %p125, %p126
      %p128 = scmp.ne.s32.totalorder %s120, %s123
      %p129 = scmp.eq.s32.totalorder %s17, 0
      %p130 = por %p128, %p129
      %p131 = scmp.ne.s32.totalorder %s120, %s123
      %p132 = scmp.eq.s32.totalorder %s22, 3
      %p133 = por %p131, %p132
      %p134 = scmp.ne.s32.totalorder %s123, %s124
      %p135 = scmp.eq.s32.totalorder %s22, 0
      %p136 = por %p134, %p135
      %p137 = scmp.ne.s32.totalorder %s123, %s124
      %p138 = scmp.eq.s32.totalorder %s23, 3
      %p139 = por %p137, %p138
      %p141 = scmp.ne.s32.totalorder %s124, %s140
      %p142 = scmp.eq.s32.totalorder %s23, 0
      %p143 = por %p141, %p142
      %s144 = ssub.s32 %s24, %s36
      %p145 = scmp.eq.s32.totalorder %s144, 0
      %s147 = sadd.s32 %s146, 1
      %s148 = scalar_select %p145, %s146, %s147
      %p151 = pneg %p145
      %p152 = scmp.eq.s32.totalorder %s17, 3
      %p153 = por %p151, %p152
      %p154 = scmp.ne.s32.totalorder %s146, %s149
      %p155 = scmp.eq.s32.totalorder %s17, 0
      %p156 = por %p154, %p155
      %p157 = scmp.ne.s32.totalorder %s146, %s149
      %p158 = scmp.eq.s32.totalorder %s22, 3
      %p159 = por %p157, %p158
      %p160 = scmp.ne.s32.totalorder %s149, %s150
      %p161 = scmp.eq.s32.totalorder %s22, 0
      %p162 = por %p160, %p161
      %p163 = scmp.ne.s32.totalorder %s149, %s150
      %p164 = scmp.eq.s32.totalorder %s23, 3
      %p165 = por %p163, %p164
      %p167 = scmp.ne.s32.totalorder %s150, %s166
      %p168 = scmp.eq.s32.totalorder %s23, 0
      %p169 = por %p167, %p168
      %p170 = scmp.le.s32.totalorder 1, %s17
      %p171 = scmp.lt.s32.totalorder %s17, 5
      %p172 = pnand %p170, %p171
      %p173 = pneg %p172
      // Predicated region
      $region9: #{tpu_custom_call.1} parent=5 // pred_check
        _
      $region10: #{tpu_custom_call.1} parent=5 // pred_check_branch
        %175 = sbr.rel (%p172) target = $region12
      $region11: #{tpu_custom_call.1} parent=5 // pred_region
        %s176 = ssub.s32 %s17, 1
        // Predicated region
        $region13: #{tpu_custom_call.1} parent=11 // pred_check
          %p177 = pneg %p110
        $region14: #{tpu_custom_call.1} parent=11 // pred_check_branch
          %179 = sbr.rel (%p177) target = $region16
        $region15: #{tpu_custom_call.1} parent=11 // pred_region
          _
        $region16: #{tpu_custom_call.1} parent=11 // pred_fallthru
          _
      $region12: #{tpu_custom_call.1} parent=5 // pred_fallthru
        _
      %p180 = scmp.lt.s32.totalorder %s17, 4
      // Predicated region
      $region17: #{tpu_custom_call.1} parent=5 // pred_check
        %p181 = pneg %p180
      $region18: #{tpu_custom_call.1} parent=5 // pred_check_branch
        %183 = sbr.rel (%p181) target = $region20
      $region19: #{tpu_custom_call.1} parent=5 // pred_region
        // Predicated region
        $region21: #{tpu_custom_call.1} parent=19 // pred_check
          %p184 = pneg %p53
        $region22: #{tpu_custom_call.1} parent=19 // pred_check_branch
          %186 = sbr.rel (%p184) target = $region24
        $region23: #{tpu_custom_call.1} parent=19 // pred_region
          %s187 = sand.u32 %s43, 1
          %s188 = sand.u32 %s43, 1
          %s189 = smul.addr %s188, 16
          %s190 = scalar_lea.vmem [#allocation4], %s189
          %s191 = smul.u32 %s24, 2
          %s192 = sadd.s32 %s191, %s25
          %s193 = smul.u32 2, %s192
          %s194 = smul.addr %s193, 4
          %s195 = scalar_lea.vmem %s0, %s194
          // Predicated region
          $region25: #{tpu_custom_call.1} parent=23 // pred_check
            _
          $region26: #{tpu_custom_call.1} parent=23 // pred_check_branch
            %197 = sbr.rel (0) target = $region28
          $region27: #{tpu_custom_call.1} parent=23 // pred_region
            // Predicated region
            $region29: #{tpu_custom_call.1} parent=27 // pred_check
              _
            $region30: #{tpu_custom_call.1} parent=27 // pred_check_branch
              %199 = sbr.rel target = $region32
            $region31: #{tpu_custom_call.1} parent=27 // pred_region
              // Predicated region
              $region44: #{tpu_custom_call.1} parent=31 // pred_check
                _
              $region45: #{tpu_custom_call.1} parent=31 // pred_check_branch
                %221 = sbr.rel (0) target = $region47
              $region46: #{tpu_custom_call.1} parent=31 // pred_region
                loop: start=0, step=1, limit=1
                $region48: #{tpu_custom_call.1} parent=46 // loop_pre_header
                  _
                $region49: #{tpu_custom_call.1} parent=46 // loop_header
                  %s223 = sphi 0, %s227
                  %p224 = scmp.ge.s32.totalorder %s223, 1
                  %s228 = sphi %s195, %s195
                  %s229 = sphi %s190, %s190
                $region50: #{tpu_custom_call.1} parent=46 // loop_header_branch
                  %226 = sbr.rel (%p224) target = $region54
                $region51: #{tpu_custom_call.1} parent=46 // loop_body
                  _
                $region52: #{tpu_custom_call.1} parent=46 // loop_footer
                  %s227 = sadd.s32 1, %s223
                $region53: #{tpu_custom_call.1} parent=46 // loop_footer_branch
                  %222 = sbr.rel target = $region49
                $region54: #{tpu_custom_call.1} parent=46 // loop_exit
                  _
                %s231 = ssub.s32 16, 1
                loop: start=0, step=1, limit=1
                $region55: #{tpu_custom_call.1} parent=46 // loop_pre_header
                  _
                $region56: #{tpu_custom_call.1} parent=46 // loop_header
                  %s233 = sphi 0, %s237
                  %p234 = scmp.ge.s32.totalorder %s233, 1
                  %s238 = sphi %s195, %s195
                  %s239 = sphi %s190, %s190
                $region57: #{tpu_custom_call.1} parent=46 // loop_header_branch
                  %236 = sbr.rel (%p234) target = $region61
                $region58: #{tpu_custom_call.1} parent=46 // loop_body
                  %v240 = vld [vmem:[%s238] sm:%s231]
                  %241 = vst [vmem:[%s239] sm:%s231] %v240
                  %v242 = vld [vmem:[%s238 + $0x4] sm:%s231]
                  %243 = vst [vmem:[%s239 + $0x4] sm:%s231] %v242
                  %v244 = vld [vmem:[%s238 + $0x20] sm:%s231]
                  %245 = vst [vmem:[%s239 + $0x8] sm:%s231] %v244
                  %v246 = vld [vmem:[%s238 + $0x24] sm:%s231]
                  %247 = vst [vmem:[%s239 + $0xc] sm:%s231] %v246
                $region59: #{tpu_custom_call.1} parent=46 // loop_footer
                  %s237 = sadd.s32 1, %s233
                $region60: #{tpu_custom_call.1} parent=46 // loop_footer_branch
                  %232 = sbr.rel target = $region56
                $region61: #{tpu_custom_call.1} parent=46 // loop_exit
                  _
              $region47: #{tpu_custom_call.1} parent=31 // pred_fallthru
                _
            $region32: #{tpu_custom_call.1} parent=27 // pred_fallthru
              _
            // Predicated region
            $region33: #{tpu_custom_call.1} parent=27 // pred_check
              _
            $region34: #{tpu_custom_call.1} parent=27 // pred_check_branch
              %201 = sbr.rel (0) target = $region36
            $region35: #{tpu_custom_call.1} parent=27 // pred_region
              %s203 = ssub.s32 16, 1
              loop: start=0, step=1, limit=1
              $region37: #{tpu_custom_call.1} parent=35 // loop_pre_header
                _
              $region38: #{tpu_custom_call.1} parent=35 // loop_header
                %s205 = sphi 0, %s209
                %p206 = scmp.ge.s32.totalorder %s205, 1
                %s210 = sphi %s195, %s195
                %s211 = sphi %s190, %s190
              $region39: #{tpu_custom_call.1} parent=35 // loop_header_branch
                %208 = sbr.rel (%p206) target = $region43
              $region40: #{tpu_custom_call.1} parent=35 // loop_body
                %v212 = vld [vmem:[%s210] sm:%s203]
                %213 = vst [vmem:[%s211] sm:%s203] %v212
                %v214 = vld [vmem:[%s210 + $0x4] sm:%s203]
                %215 = vst [vmem:[%s211 + $0x4] sm:%s203] %v214
                %v216 = vld [vmem:[%s210 + $0x20] sm:%s203]
                %217 = vst [vmem:[%s211 + $0x8] sm:%s203] %v216
                %v218 = vld [vmem:[%s210 + $0x24] sm:%s203]
                %219 = vst [vmem:[%s211 + $0xc] sm:%s203] %v218
              $region41: #{tpu_custom_call.1} parent=35 // loop_footer
                %s209 = sadd.s32 1, %s205
              $region42: #{tpu_custom_call.1} parent=35 // loop_footer_branch
                %204 = sbr.rel target = $region38
              $region43: #{tpu_custom_call.1} parent=35 // loop_exit
                _
            $region36: #{tpu_custom_call.1} parent=27 // pred_fallthru
              _
          $region28: #{tpu_custom_call.1} parent=23 // pred_fallthru
            _
          %248 = vnop
        $region24: #{tpu_custom_call.1} parent=19 // pred_fallthru
          _
        // Predicated region
        $region62: #{tpu_custom_call.1} parent=19 // pred_check
          %p249 = pneg %p83
        $region63: #{tpu_custom_call.1} parent=19 // pred_check_branch
          %251 = sbr.rel (%p249) target = $region65
        $region64: #{tpu_custom_call.1} parent=19 // pred_region
          %s252 = sand.u32 %s73, 1
          %s253 = sand.u32 %s73, 1
          %s254 = smul.addr %s253, 16
          %s255 = scalar_lea.vmem [#allocation5], %s254
          %s256 = smul.u32 %s24, 2
          %s257 = sadd.s32 %s256, %s25
          %s258 = smul.u32 2, %s257
          %s259 = smul.addr %s258, 4
          %s260 = scalar_lea.vmem %s1, %s259
          // Predicated region
          $region66: #{tpu_custom_call.1} parent=64 // pred_check
            _
          $region67: #{tpu_custom_call.1} parent=64 // pred_check_branch
            %262 = sbr.rel (0) target = $region69
          $region68: #{tpu_custom_call.1} parent=64 // pred_region
            // Predicated region
            $region70: #{tpu_custom_call.1} parent=68 // pred_check
              _
            $region71: #{tpu_custom_call.1} parent=68 // pred_check_branch
              %264 = sbr.rel target = $region73
            $region72: #{tpu_custom_call.1} parent=68 // pred_region
              // Predicated region
              $region85: #{tpu_custom_call.1} parent=72 // pred_check
                _
              $region86: #{tpu_custom_call.1} parent=72 // pred_check_branch
                %286 = sbr.rel (0) target = $region88
              $region87: #{tpu_custom_call.1} parent=72 // pred_region
                loop: start=0, step=1, limit=1
                $region89: #{tpu_custom_call.1} parent=87 // loop_pre_header
                  _
                $region90: #{tpu_custom_call.1} parent=87 // loop_header
                  %s288 = sphi 0, %s292
                  %p289 = scmp.ge.s32.totalorder %s288, 1
                  %s293 = sphi %s260, %s260
                  %s294 = sphi %s255, %s255
                $region91: #{tpu_custom_call.1} parent=87 // loop_header_branch
                  %291 = sbr.rel (%p289) target = $region95
                $region92: #{tpu_custom_call.1} parent=87 // loop_body
                  _
                $region93: #{tpu_custom_call.1} parent=87 // loop_footer
                  %s292 = sadd.s32 1, %s288
                $region94: #{tpu_custom_call.1} parent=87 // loop_footer_branch
                  %287 = sbr.rel target = $region90
                $region95: #{tpu_custom_call.1} parent=87 // loop_exit
                  _
                %s296 = ssub.s32 16, 1
                loop: start=0, step=1, limit=1
                $region96: #{tpu_custom_call.1} parent=87 // loop_pre_header
                  _
                $region97: #{tpu_custom_call.1} parent=87 // loop_header
                  %s298 = sphi 0, %s302
                  %p299 = scmp.ge.s32.totalorder %s298, 1
                  %s303 = sphi %s260, %s260
                  %s304 = sphi %s255, %s255
                $region98: #{tpu_custom_call.1} parent=87 // loop_header_branch
                  %301 = sbr.rel (%p299) target = $region102
                $region99: #{tpu_custom_call.1} parent=87 // loop_body
                  %v305 = vld [vmem:[%s303] sm:%s296]
                  %306 = vst [vmem:[%s304] sm:%s296] %v305
                  %v307 = vld [vmem:[%s303 + $0x4] sm:%s296]
                  %308 = vst [vmem:[%s304 + $0x4] sm:%s296] %v307
                  %v309 = vld [vmem:[%s303 + $0x20] sm:%s296]
                  %310 = vst [vmem:[%s304 + $0x8] sm:%s296] %v309
                  %v311 = vld [vmem:[%s303 + $0x24] sm:%s296]
                  %312 = vst [vmem:[%s304 + $0xc] sm:%s296] %v311
                $region100: #{tpu_custom_call.1} parent=87 // loop_footer
                  %s302 = sadd.s32 1, %s298
                $region101: #{tpu_custom_call.1} parent=87 // loop_footer_branch
                  %297 = sbr.rel target = $region97
                $region102: #{tpu_custom_call.1} parent=87 // loop_exit
                  _
              $region88: #{tpu_custom_call.1} parent=72 // pred_fallthru
                _
            $region73: #{tpu_custom_call.1} parent=68 // pred_fallthru
              _
            // Predicated region
            $region74: #{tpu_custom_call.1} parent=68 // pred_check
              _
            $region75: #{tpu_custom_call.1} parent=68 // pred_check_branch
              %266 = sbr.rel (0) target = $region77
            $region76: #{tpu_custom_call.1} parent=68 // pred_region
              %s268 = ssub.s32 16, 1
              loop: start=0, step=1, limit=1
              $region78: #{tpu_custom_call.1} parent=76 // loop_pre_header
                _
              $region79: #{tpu_custom_call.1} parent=76 // loop_header
                %s270 = sphi 0, %s274
                %p271 = scmp.ge.s32.totalorder %s270, 1
                %s275 = sphi %s260, %s260
                %s276 = sphi %s255, %s255
              $region80: #{tpu_custom_call.1} parent=76 // loop_header_branch
                %273 = sbr.rel (%p271) target = $region84
              $region81: #{tpu_custom_call.1} parent=76 // loop_body
                %v277 = vld [vmem:[%s275] sm:%s268]
                %278 = vst [vmem:[%s276] sm:%s268] %v277
                %v279 = vld [vmem:[%s275 + $0x4] sm:%s268]
                %280 = vst [vmem:[%s276 + $0x4] sm:%s268] %v279
                %v281 = vld [vmem:[%s275 + $0x20] sm:%s268]
                %282 = vst [vmem:[%s276 + $0x8] sm:%s268] %v281
                %v283 = vld [vmem:[%s275 + $0x24] sm:%s268]
                %284 = vst [vmem:[%s276 + $0xc] sm:%s268] %v283
              $region82: #{tpu_custom_call.1} parent=76 // loop_footer
                %s274 = sadd.s32 1, %s270
              $region83: #{tpu_custom_call.1} parent=76 // loop_footer_branch
                %269 = sbr.rel target = $region79
              $region84: #{tpu_custom_call.1} parent=76 // loop_exit
                _
            $region77: #{tpu_custom_call.1} parent=68 // pred_fallthru
              _
          $region69: #{tpu_custom_call.1} parent=64 // pred_fallthru
            _
          %313 = vnop
        $region65: #{tpu_custom_call.1} parent=19 // pred_fallthru
          _
      $region20: #{tpu_custom_call.1} parent=5 // pred_fallthru
        _
      %p314 = scmp.le.s32.totalorder 1, %s17
      %p315 = scmp.lt.s32.totalorder %s17, 5
      %p316 = pnand %p314, %p315
      %p317 = pneg %p316
      // Predicated region
      $region103: #{tpu_custom_call.1} parent=5 // pred_check
        _
      $region104: #{tpu_custom_call.1} parent=5 // pred_check_branch
        %319 = sbr.rel (%p316) target = $region106
      $region105: #{tpu_custom_call.1} parent=5 // pred_region
        %s320 = ssub.s32 %s17, 1
        %s321 = sand.u32 %s46, 1
        %s322 = sand.u32 %s46, 1
        %s323 = smul.addr %s322, 16
        %s324 = scalar_lea.vmem [#allocation4], %s323
        // Predicated region
        $region107: #{tpu_custom_call.1} parent=105 // pred_check
          %p325 = pneg %p59
        $region108: #{tpu_custom_call.1} parent=105 // pred_check_branch
          %327 = sbr.rel (%p325) target = $region110
        $region109: #{tpu_custom_call.1} parent=105 // pred_region
          _
        $region110: #{tpu_custom_call.1} parent=105 // pred_fallthru
          _
        %s328 = sand.u32 %s76, 1
        %s329 = sand.u32 %s76, 1
        %s330 = smul.addr %s329, 16
        %s331 = scalar_lea.vmem [#allocation5], %s330
        // Predicated region
        $region111: #{tpu_custom_call.1} parent=105 // pred_check
          %p332 = pneg %p89
        $region112: #{tpu_custom_call.1} parent=105 // pred_check_branch
          %334 = sbr.rel (%p332) target = $region114
        $region113: #{tpu_custom_call.1} parent=105 // pred_region
          _
        $region114: #{tpu_custom_call.1} parent=105 // pred_fallthru
          _
        %s335 = sand.u32 %s46, 1
        %s336 = sand.u32 %s46, 1
        %s337 = smul.addr %s336, 16
        %s338 = scalar_lea.vmem [#allocation4], %s337
        %p339 = pneg %p59
        %p340 = pneg %p56
        %s341 = sand.u32 %s76, 1
        %s342 = sand.u32 %s76, 1
        %s343 = smul.addr %s342, 16
        %s344 = scalar_lea.vmem [#allocation5], %s343
        %p345 = pneg %p89
        %p346 = pneg %p86
        %p347 = pneg %p110
        %p348 = pneg %p107
        %p349 = pneg %p136
        %p350 = pneg %p133
        %s351 = sand.u32 %s123, 1
        %s352 = scalar_lea.sflag [#allocation7], %s351
        %s353 = sand.u32 %s123, 1
        %s354 = smul.addr %s353, 2
        %s355 = scalar_lea.vmem [#allocation6], %s354
        %p356 = pneg %p162
        %p357 = pneg %p159
        %s358 = sand.u32 %s149, 1
        %s359 = scalar_lea.sflag [#allocation9], %s358
        %s360 = sand.u32 %s149, 1
        %s361 = smul.addr %s360, 2
        %s362 = scalar_lea.vmem [#allocation8], %s361
        %s363 = smul.u32 %s26, 2
        %s364 = sadd.s32 %s363, %s27
        %s365 = smul.u32 2, %s364
        %s366 = smul.u32 %s26, 2
        %s367 = sadd.s32 %s366, %s27
        %s368 = smul.u32 2, %s367
        %p370 = scmp.eq.s32.totalorder %s27, 0
        // Predicated region
        $region115: #{tpu_custom_call.1} parent=105 // pred_check
          %p371 = pneg %p370
        $region116: #{tpu_custom_call.1} parent=105 // pred_check_branch
          %373 = sbr.rel (%p371) target = $region118
        $region117: #{tpu_custom_call.1} parent=105 // pred_region
          %vm374 = vcmask 253952
          %375 = vst.msk [vmem:[#allocation2] sm:$0x1] %vm374, 0.0
          %376 = vst.msk [vmem:[#allocation2 + $0x1] sm:$0x1] %vm374, 0.0
          %377 = vst.msk [vmem:[#allocation3] sm:$0x1] %vm374, 0.0
          %378 = vst.msk [vmem:[#allocation3 + $0x1] sm:$0x1] %vm374, 0.0
        $region118: #{tpu_custom_call.1} parent=105 // pred_fallthru
          _
        %s379 = smul.u32 %s26, 2
        %s380 = sadd.s32 %s379, %s27
        %s381 = smul.u32 %s380, 2
        %s382 = scalar_lea.vmem %s2, %s381
        %v383 = vld [vmem:[%s382] sm:$0x1]
        %v384 = vld [vmem:[%s382 + $0x1] sm:$0x1]
        %v385 = vld [vmem:[#allocation2] sm:$0x1]
        %v386 = vld [vmem:[#allocation2 + $0x1] sm:$0x1]
        %v387 = vld [vmem:[%s324] sm:$0xf]
        %v388 = vld [vmem:[%s324 + $0x4] sm:$0xf]
        %v389 = vld [vmem:[%s324 + $0x8] sm:$0xf]
        %v390 = vld [vmem:[%s324 + $0xc] sm:$0xf]
        %v393 = vunpack.c.l.b16 %v387
        %v394 = vunpack.c.l.b16 %v388
        %v395 = vpack.c.b16 %v394, %v393
        %vm397 = vcmask 130048
        %v399 = vsel %vm397, %v383, 0
        %401 = vmatpush.bf16.msra.mxu0 0
        %402 = vmatpush.bf16.msra.mxu0 0
        %403 = vmatpush.bf16.msra.mxu0 0
        %404 = vmatpush.bf16.msra.mxu0 0
        %405 = vmatpush.bf16.msra.mxu0 0
        %406 = vmatpush.bf16.msra.mxu0 0
        %407 = vmatpush.bf16.msra.mxu0 0
        %408 = vmatpush.bf16.msra.mxu0 %v395
        %409 = vmatmul.bf16.gmra.mxu0 %v399
        %v410 = vpop.f32.mrf.mxu0
        %v411 = vadd.f32 0.0, %v410
        %v412 = vpop.f32.mrf.mxu0
        %413 = vdwg.mxu0
        %v416 = vunpack.c.l.b16 %v389
        %v417 = vunpack.c.l.b16 %v390
        %v418 = vpack.c.b16 %v417, %v416
        %v421 = vsel %vm397, %v384, 0
        %423 = vmatpush.bf16.msra.mxu0 0
        %424 = vmatpush.bf16.msra.mxu0 0
        %425 = vmatpush.bf16.msra.mxu0 0
        %426 = vmatpush.bf16.msra.mxu0 0
        %427 = vmatpush.bf16.msra.mxu0 0
        %428 = vmatpush.bf16.msra.mxu0 0
        %429 = vmatpush.bf16.msra.mxu0 0
        %430 = vmatpush.bf16.msra.mxu0 %v418
        %431 = vmatmul.bf16.gmra.mxu0 %v421
        %v432 = vpop.f32.mrf.mxu0
        %v433 = vadd.f32 0.0, %v432
        %v434 = vpop.f32.mrf.mxu0
        %435 = vdwg.mxu0
        %v436 = vadd.f32 %v385, %v411
        %v437 = vadd.f32 %v386, %v433
        %vm438 = vcmask 253952
        %439 = vst.msk [vmem:[#allocation2] sm:$0x1] %vm438, %v436
        %440 = vst.msk [vmem:[#allocation2 + $0x1] sm:$0x1] %vm438, %v437
        %v441 = vld [vmem:[#allocation3] sm:$0x1]
        %v442 = vld [vmem:[#allocation3 + $0x1] sm:$0x1]
        %v443 = vld [vmem:[%s331] sm:$0xf]
        %v444 = vld [vmem:[%s331 + $0x4] sm:$0xf]
        %v445 = vld [vmem:[%s331 + $0x8] sm:$0xf]
        %v446 = vld [vmem:[%s331 + $0xc] sm:$0xf]
        %v449 = vunpack.c.l.b16 %v443
        %v450 = vunpack.c.l.b16 %v444
        %v451 = vpack.c.b16 %v450, %v449
        %453 = vmatpush.bf16.msra.mxu0 0
        %454 = vmatpush.bf16.msra.mxu0 0
        %455 = vmatpush.bf16.msra.mxu0 0
        %456 = vmatpush.bf16.msra.mxu0 0
        %457 = vmatpush.bf16.msra.mxu0 0
        %458 = vmatpush.bf16.msra.mxu0 0
        %459 = vmatpush.bf16.msra.mxu0 0
        %460 = vmatpush.bf16.msra.mxu0 %v451
        %461 = vmatmul.bf16.gmra.mxu0 %v399
        %v462 = vpop.f32.mrf.mxu0
        %v463 = vadd.f32 0.0, %v462
        %v464 = vpop.f32.mrf.mxu0
        %465 = vdwg.mxu0
        %v468 = vunpack.c.l.b16 %v445
        %v469 = vunpack.c.l.b16 %v446
        %v470 = vpack.c.b16 %v469, %v468
        %472 = vmatpush.bf16.msra.mxu0 0
        %473 = vmatpush.bf16.msra.mxu0 0
        %474 = vmatpush.bf16.msra.mxu0 0
        %475 = vmatpush.bf16.msra.mxu0 0
        %476 = vmatpush.bf16.msra.mxu0 0
        %477 = vmatpush.bf16.msra.mxu0 0
        %478 = vmatpush.bf16.msra.mxu0 0
        %479 = vmatpush.bf16.msra.mxu0 %v470
        %480 = vmatmul.bf16.gmra.mxu0 %v421
        %v481 = vpop.f32.mrf.mxu0
        %v482 = vadd.f32 0.0, %v481
        %v483 = vpop.f32.mrf.mxu0
        %484 = vdwg.mxu0
        %v485 = vadd.f32 %v441, %v463
        %v486 = vadd.f32 %v442, %v482
        %487 = vst.msk [vmem:[#allocation3] sm:$0x1] %vm438, %v485
        %488 = vst.msk [vmem:[#allocation3 + $0x1] sm:$0x1] %vm438, %v486
        %p489 = scmp.eq.s32.totalorder %s27, 1
        // Predicated region
        $region119: #{tpu_custom_call.1} parent=105 // pred_check
          %p490 = pneg %p489
        $region120: #{tpu_custom_call.1} parent=105 // pred_check_branch
          %492 = sbr.rel (%p490) target = $region122
        $region121: #{tpu_custom_call.1} parent=105 // pred_region
          %v493 = vld [vmem:[#allocation2] sm:$0x1]
          %v494 = vld [vmem:[#allocation2 + $0x1] sm:$0x1]
          %495 = vst.msk [vmem:[%s355] sm:$0x1] %vm438, %v493
          %496 = vst.msk [vmem:[%s355 + $0x1] sm:$0x1] %vm438, %v494
          %v497 = vld [vmem:[#allocation3] sm:$0x1]
          %v498 = vld [vmem:[#allocation3 + $0x1] sm:$0x1]
          %499 = vst.msk [vmem:[%s362] sm:$0x1] %vm438, %v497
          %500 = vst.msk [vmem:[%s362 + $0x1] sm:$0x1] %vm438, %v498
        $region122: #{tpu_custom_call.1} parent=105 // pred_fallthru
          _
        %s501 = sand.u32 %s123, 1
        %s502 = scalar_lea.sflag [#allocation7], %s501
        %s503 = sand.u32 %s123, 1
        %s504 = smul.addr %s503, 2
        %s505 = scalar_lea.vmem [#allocation6], %s504
        %s506 = sand.u32 %s149, 1
        %s507 = scalar_lea.sflag [#allocation9], %s506
        %s508 = sand.u32 %s149, 1
        %s509 = smul.addr %s508, 2
        %s510 = scalar_lea.vmem [#allocation8], %s509
        // Predicated region
        $region123: #{tpu_custom_call.1} parent=105 // pred_check
          %p511 = pneg %p133
        $region124: #{tpu_custom_call.1} parent=105 // pred_check_branch
          %513 = sbr.rel (%p511) target = $region126
        $region125: #{tpu_custom_call.1} parent=105 // pred_region
          %515 = vsyncadd %s502, 0
          %s516 = smul.addr %s26, 2
          %s517 = scalar_lea.hbm %s3, %s516
          %s518 = sshll.u32 %s505, 4
          %s519 = int_to_ptr.vmem [resolvable:$true] %s518
          %s520 = sshll.u32 %s517, 4
          %s521 = int_to_ptr.hbm [resolvable:$true] %s520
          %526 = dma.vmem_to_hbm [thread:$0]  %s519, 32, %s521, %s502, 16, 16, 1
        $region126: #{tpu_custom_call.1} parent=105 // pred_fallthru
          _
        // Predicated region
        $region127: #{tpu_custom_call.1} parent=105 // pred_check
          %p527 = pneg %p159
        $region128: #{tpu_custom_call.1} parent=105 // pred_check_branch
          %529 = sbr.rel (%p527) target = $region130
        $region129: #{tpu_custom_call.1} parent=105 // pred_region
          %531 = vsyncadd %s507, 0
          %s532 = smul.addr %s26, 2
          %s533 = scalar_lea.hbm %s4, %s532
          %s534 = sshll.u32 %s510, 4
          %s535 = int_to_ptr.vmem [resolvable:$true] %s534
          %s536 = sshll.u32 %s533, 4
          %s537 = int_to_ptr.hbm [resolvable:$true] %s536
          %542 = dma.vmem_to_hbm [thread:$0]  %s535, 32, %s537, %s507, 16, 16, 1
        $region130: #{tpu_custom_call.1} parent=105 // pred_fallthru
          _
      $region106: #{tpu_custom_call.1} parent=5 // pred_fallthru
        _
      %p543 = scmp.le.s32.totalorder 2, %s17
      // Predicated region
      $region131: #{tpu_custom_call.1} parent=5 // pred_check
        %p544 = pneg %p543
      $region132: #{tpu_custom_call.1} parent=5 // pred_check_branch
        %546 = sbr.rel (%p544) target = $region134
      $region133: #{tpu_custom_call.1} parent=5 // pred_region
        %s547 = ssub.s32 %s17, 2
        // Predicated region
        $region135: #{tpu_custom_call.1} parent=133 // pred_check
          %p548 = pneg %p139
        $region136: #{tpu_custom_call.1} parent=133 // pred_check_branch
          %550 = sbr.rel (%p548) target = $region138
        $region137: #{tpu_custom_call.1} parent=133 // pred_region
          %s551 = sand.u32 %s124, 1
          %s552 = scalar_lea.sflag [#allocation7], %s551
          %s553 = sand.u32 %s124, 1
          %s554 = smul.addr %s553, 2
          %s555 = scalar_lea.vmem [#allocation6], %s554
          %557 = dma.done %s552, 32
        $region138: #{tpu_custom_call.1} parent=133 // pred_fallthru
          _
        // Predicated region
        $region139: #{tpu_custom_call.1} parent=133 // pred_check
          %p558 = pneg %p165
        $region140: #{tpu_custom_call.1} parent=133 // pred_check_branch
          %560 = sbr.rel (%p558) target = $region142
        $region141: #{tpu_custom_call.1} parent=133 // pred_region
          %s561 = sand.u32 %s150, 1
          %s562 = scalar_lea.sflag [#allocation9], %s561
          %s563 = sand.u32 %s150, 1
          %s564 = smul.addr %s563, 2
          %s565 = scalar_lea.vmem [#allocation8], %s564
          %567 = dma.done %s562, 32
        $region142: #{tpu_custom_call.1} parent=133 // pred_fallthru
          _
      $region134: #{tpu_custom_call.1} parent=5 // pred_fallthru
        _
    $region6: #{tpu_custom_call.1} parent=1 // loop_footer
      %s21 = sadd.s32 1, %s17
    $region7: #{tpu_custom_call.1} parent=1 // loop_footer_branch
      %16 = sbr.rel target = $region3
    $region8: #{tpu_custom_call.1} parent=1 // loop_exit
      _
    %568 = vsyncpa [#allocation7], 1
    %s569 = scalar_lea.sflag [#allocation7], 1
    %570 = vsyncpa %s569, 1
    %571 = vsyncpa [#allocation9], 1
    %s572 = scalar_lea.sflag [#allocation9], 1
    %573 = vsyncpa %s572, 1

</llo_original>
